<compile_context>
chip_gen: v7x
topology: tpu7x:2x2x1
jax: 0.10.0
libtpu: 0.0.40
codegen_flags: <defaults>
</compile_context>

<pallas_src>
import functools

import jax
import jax.numpy as jnp
from jax.experimental import pallas as pl
from jax.experimental.pallas import tpu as pltpu


def _reward_criterion_kernel(logp_ref, side_ref, out_ref, *, n_rows):
    """out[r, 0] = logp[r, seq[r]] * coef[r]   (coef = -(reward*mask))."""
    i = pl.program_id(0)          # row-block index ("parallel")
    j = pl.program_id(1)          # vocab-tile index ("arbitrary" reduction)

    logp = logp_ref[...]                                   # (rb, tv), native dtype
    side = side_ref[...]                                   # (rb, 2) int32
    seq = side[:, 0:1]                                     # (rb, 1) int32 token ids
    coef = pltpu.bitcast(side[:, 1:2], jnp.float32)        # (rb, 1) f32 = -(reward*mask)

    rb, tv = logp.shape
    # One-hot select against a lane iota offset by this vocab tile; select in the
    # native dtype, accumulate the row-gather in f32.
    col = jax.lax.broadcasted_iota(jnp.int32, (1, tv), 1) + j * tv
    selected = jnp.where(col == seq, logp, jnp.zeros((), logp.dtype))
    gathered = jnp.sum(selected.astype(jnp.float32), axis=1, keepdims=True)  # (rb, 1)

    # Ragged-tail guard: rows past n_rows come from a clamped DMA and may hold
    # garbage (possibly NaN); mask them explicitly instead of relying on coef==0.
    row = jax.lax.broadcasted_iota(jnp.int32, (rb, 1), 0) + i * rb
    contrib = jnp.where(row < n_rows, gathered * coef, 0.0)

    @pl.when(j == 0)
    def _():
        out_ref[...] = contrib

    @pl.when(j > 0)
    def _():
        out_ref[...] += contrib


def _choose_tiles(n_rows, vocab, itemsize, target_block_bytes):
    """Pick (row_block, vocab_tile) so one logp block is ~target_block_bytes."""
    row_align = {4: 8, 2: 16, 1: 32}.get(itemsize, 8)      # sublane packing

    # Tile the vocab axis only when even `row_align` full-V rows blow the budget
    # (very large vocabularies, important on v7x's 64 MiB VMEM).
    if row_align * vocab * itemsize > target_block_bytes and vocab > 128:
        tv = (target_block_bytes // (row_align * itemsize)) // 128 * 128
        tv = max(128, min(tv, vocab))
    else:
        tv = vocab

    rb = target_block_bytes // (tv * itemsize)
    rb = min(rb, n_rows)
    if rb >= row_align:
        rb = rb // row_align * row_align
    elif rb >= 8:
        rb = rb // 8 * 8
    else:
        rb = n_rows                                        # tiny input: one full block
    return rb, tv


def reward_criterion(logp, seq, reward):
    """Pallas implementation of RewardCriterion.forward."""
    if logp.ndim == 4:
        logp = logp.reshape(logp.shape[0], -1, logp.shape[-1])
    if seq.ndim == 3:
        seq = seq.reshape(seq.shape[0], -1)

    B, T, V = logp.shape
    seq = seq.astype(jnp.int32)
    reward = jnp.asarray(reward, jnp.float32).reshape(B, T)

    # mask[:, 0] = 1 ; mask[:, t] = (seq[:, t-1] > 0)  -- tiny (B, T) work in JAX.
    mask = jnp.concatenate(
        [jnp.ones((B, 1), jnp.float32), (seq[:, :-1] > 0).astype(jnp.float32)],
        axis=1,
    )
    coef = -(reward * mask)                                # negation folded in

    N = B * T
    itemsize = jnp.dtype(logp.dtype).itemsize

    # Generation-aware block sizing: ~16 MiB blocks, double-buffered, with
    # headroom inside v7x's 64 MiB VMEM (v5e/v6e have 128 MiB).
    try:
        vmem_cap = int(pltpu.get_tpu_info().vmem_capacity_bytes)
    except Exception:
        vmem_cap = 64 * 1024 * 1024
    target_block_bytes = min(16 * 1024 * 1024, vmem_cap // 4)
    vmem_limit = min(vmem_cap * 3 // 4, 2 * target_block_bytes + (8 << 20))

    rb, tv = _choose_tiles(N, V, itemsize, target_block_bytes)
    nr = pl.cdiv(N, rb)
    nv = pl.cdiv(V, tv)

    logp_flat = logp.reshape(N, V)                         # native dtype, no pad, no copy
    side = jnp.stack(
        [seq.reshape(N), jax.lax.bitcast_convert_type(coef.reshape(N), jnp.int32)],
        axis=-1,
    )                                                      # (N, 2) int32, single side DMA

    cost = pl.CostEstimate(
        flops=3 * N * V,
        transcendentals=0,
        bytes_accessed=N * V * itemsize + N * 2 * 4 + N * 4,
    )

    kernel = functools.partial(_reward_criterion_kernel, n_rows=N)
    partials = pl.pallas_call(
        kernel,
        out_shape=jax.ShapeDtypeStruct((N, 1), jnp.float32),
        grid_spec=pltpu.PrefetchScalarGridSpec(
            num_scalar_prefetch=0,
            grid=(nr, nv),
            in_specs=[
                pl.BlockSpec((rb, tv), lambda i, j: (i, j)),
                pl.BlockSpec((rb, 2), lambda i, j: (i, 0)),
            ],
            out_specs=pl.BlockSpec((rb, 1), lambda i, j: (i, 0)),
        ),
        compiler_params=pltpu.CompilerParams(
            dimension_semantics=("parallel", "arbitrary"),
            vmem_limit_bytes=vmem_limit,
        ),
        cost_estimate=cost,
    )(logp_flat, side)

    # Tiny epilogue: numerator sum over per-row partials, denominator = sum(mask).
    return jnp.sum(partials) / jnp.sum(mask)


def _reference(logp, seq, reward):
    """Pure-JAX reference mirroring the PyTorch forward."""
    B, T, V = logp.shape
    gathered = jnp.take_along_axis(logp, seq[..., None], axis=2)[..., 0]   # (B, T)
    mask = (seq > 0).astype(logp.dtype)
    mask = jnp.concatenate([jnp.ones((B, 1), logp.dtype), mask[:, :-1]], axis=1)
    out = -gathered.reshape(-1) * reward.reshape(-1) * mask.reshape(-1)
    return jnp.sum(out) / jnp.sum(mask)


if __name__ == "__main__":
    key = jax.random.PRNGKey(0)
    k1, k2, k3 = jax.random.split(key, 3)

    B, T, V = 2, 8, 128
    logits = jax.random.normal(k1, (B, T, V), dtype=jnp.float32)
    logp = jax.nn.log_softmax(logits, axis=-1)
    # sampled token ids, with zeros so the mask logic is exercised
    seq = jax.random.randint(k2, (B, T), minval=0, maxval=V, dtype=jnp.int32)
    seq = seq.at[0, 5:].set(0).at[1, 3:].set(0)
    reward = jax.random.normal(k3, (B, T), dtype=jnp.float32)

    # f32 path
    loss = jax.block_until_ready(reward_criterion(logp, seq, reward))
    ref = _reference(logp, seq, reward)
    assert jnp.allclose(loss, ref, atol=1e-5, rtol=1e-5), (loss, ref)

    # bf16 path: kernel streams bf16 directly, accumulates in f32
    logp_bf16 = logp.astype(jnp.bfloat16)
    loss_bf16 = jax.block_until_ready(reward_criterion(logp_bf16, seq, reward))
    ref_bf16 = _reference(logp_bf16.astype(jnp.float32), seq, reward)
    assert jnp.allclose(loss_bf16, ref_bf16, atol=1e-4, rtol=1e-4), (loss_bf16, ref_bf16)

    print("KERNEL_OK")
</pallas_src>

<mosaic_0001>
module attributes {stable_mosaic.version = 11 : i64} {
  func.func @_reward_criterion_kernel(%arg0: i32, %arg1: i32, %arg2: memref<16x128xf32, #tpu.memory_space<vmem>>, %arg3: memref<16x2xi32, #tpu.memory_space<vmem>>, %arg4: memref<16x1xf32, #tpu.memory_space<vmem>>) attributes {dimension_semantics = [#tpu.dimension_semantics<parallel>, #tpu.dimension_semantics<arbitrary>], iteration_bounds = array<i64: 1, 1>, scalar_prefetch = 0 : i64, scratch_operands = 0 : i64, tpu.core_type = #tpu.core_type<tc>, window_params = [{transform_indices = @transform_0, window_bounds = array<i64: 16, 128>}, {transform_indices = @transform_1, window_bounds = array<i64: 16, 2>}, {transform_indices = @transform_2, window_bounds = array<i64: 16, 1>}]} {
    %c0 = arith.constant 0 : index
    %c0_0 = arith.constant 0 : index
    %0 = vector.load %arg2[%c0, %c0_0] : memref<16x128xf32, #tpu.memory_space<vmem>>, vector<16x128xf32>
    %c0_1 = arith.constant 0 : index
    %c0_2 = arith.constant 0 : index
    %1 = vector.load %arg3[%c0_1, %c0_2] : memref<16x2xi32, #tpu.memory_space<vmem>>, vector<16x2xi32>
    %2 = vector.extract_strided_slice %1 {offsets = [0, 0], sizes = [16, 1], strides = [1, 1]} : vector<16x2xi32> to vector<16x1xi32>
    %3 = vector.extract_strided_slice %1 {offsets = [0, 1], sizes = [16, 1], strides = [1, 1]} : vector<16x2xi32> to vector<16x1xi32>
    %4 = tpu.bitcast %3 : vector<16x1xi32> -> vector<16x1xf32>
    %5 = tpu.iota {dimensions = array<i32: 1>} : vector<1x128xi32>
    %c128_i32 = arith.constant 128 : i32
    %6 = arith.muli %arg1, %c128_i32 : i32
    %7 = vector.broadcast %6 : i32 to vector<1x128xi32>
    %8 = arith.addi %5, %7 : vector<1x128xi32>
    %9 = vector.broadcast %8 : vector<1x128xi32> to vector<16x128xi32>
    %10 = vector.broadcast %2 : vector<16x1xi32> to vector<16x128xi32>
    %11 = arith.cmpi eq, %9, %10 : vector<16x128xi32>
    %cst = arith.constant 0.000000e+00 : f32
    %12 = vector.broadcast %cst : f32 to vector<16x128xf32>
    %13 = arith.select %11, %0, %12 : vector<16x128xi1>, vector<16x128xf32>
    %cst_3 = arith.constant dense<0.000000e+00> : vector<16xf32>
    %14 = vector.multi_reduction <add>, %13, %cst_3 [1] : vector<16x128xf32> to vector<16xf32>
    %15 = vector.shape_cast %14 : vector<16xf32> to vector<16x1xf32>
    %16 = tpu.iota {dimensions = array<i32: 0>} : vector<16x1xi32>
    %c16_i32 = arith.constant 16 : i32
    %17 = arith.muli %arg0, %c16_i32 : i32
    %18 = vector.broadcast %17 : i32 to vector<16x1xi32>
    %19 = arith.addi %16, %18 : vector<16x1xi32>
    %c16_i32_4 = arith.constant 16 : i32
    %20 = vector.broadcast %c16_i32_4 : i32 to vector<16x1xi32>
    %21 = arith.cmpi slt, %19, %20 : vector<16x1xi32>
    %22 = arith.mulf %15, %4 : vector<16x1xf32>
    %cst_5 = arith.constant 0.000000e+00 : f32
    %23 = vector.broadcast %cst_5 : f32 to vector<16x1xf32>
    %24 = arith.select %21, %22, %23 : vector<16x1xi1>, vector<16x1xf32>
    %c0_i32 = arith.constant 0 : i32
    %25 = arith.cmpi eq, %arg1, %c0_i32 : i32
    %26 = arith.extui %25 : i1 to i32
    %c0_i32_6 = arith.constant 0 : i32
    %27 = arith.cmpi ne, %26, %c0_i32_6 : i32
    scf.if %27 {
      %c0_9 = arith.constant 0 : index
      %c0_10 = arith.constant 0 : index
      %31 = vector.load %arg4[%c0_9, %c0_10] : memref<16x1xf32, #tpu.memory_space<vmem>>, vector<16x1xf32>
      tpu.vector_store %arg4[%c0_9, %c0_10], %24 {strides = array<i32>} : memref<16x1xf32, #tpu.memory_space<vmem>>, vector<16x1xf32>,
    } else {
    }
    %c0_i32_7 = arith.constant 0 : i32
    %28 = arith.cmpi sgt, %arg1, %c0_i32_7 : i32
    %29 = arith.extui %28 : i1 to i32
    %c0_i32_8 = arith.constant 0 : i32
    %30 = arith.cmpi ne, %29, %c0_i32_8 : i32
    scf.if %30 {
      %c0_9 = arith.constant 0 : index
      %c0_10 = arith.constant 0 : index
      %31 = vector.load %arg4[%c0_9, %c0_10] : memref<16x1xf32, #tpu.memory_space<vmem>>, vector<16x1xf32>
      %32 = arith.addf %31, %24 : vector<16x1xf32>
      %c0_11 = arith.constant 0 : index
      %c0_12 = arith.constant 0 : index
      %33 = vector.load %arg4[%c0_11, %c0_12] : memref<16x1xf32, #tpu.memory_space<vmem>>, vector<16x1xf32>
      tpu.vector_store %arg4[%c0_11, %c0_12], %32 {strides = array<i32>} : memref<16x1xf32, #tpu.memory_space<vmem>>, vector<16x1xf32>,
    } else {
    }
    return
  }
  func.func @transform_0(%arg0: i32, %arg1: i32) -> (i32, i32) {
    %c0_i32 = arith.constant 0 : i32
    return %arg0, %arg1 : i32, i32
  }
  func.func @transform_1(%arg0: i32, %arg1: i32) -> (i32, i32) {
    %c0_i32 = arith.constant 0 : i32
    %c0_i32_0 = arith.constant 0 : i32
    return %arg0, %c0_i32 : i32, i32
  }
  func.func @transform_2(%arg0: i32, %arg1: i32) -> (i32, i32) {
    %c0_i32 = arith.constant 0 : i32
    %c0_i32_0 = arith.constant 0 : i32
    return %arg0, %c0_i32 : i32, i32
  }
}

</mosaic_0001>

<llo_original>
// kernel: tpu_custom_call.1
$region0: #{tpu_custom_call.1}
  #allocation0 [shape = 'u32[]', space=smem, size = 0x4, offset = 0x4, fixed_abs, tag = 'smem constant byte address 0x4 - core index']
  #allocation1 [shape = 'u32[144,128]{1,0:T(1,128)}', space=vmem, size = 0x12000, scoped, tag = 'internal scratch']
  %s0 = inlined_call_operand.vmem [shape: f32[16,128], index: 0, kind: input, shape index: {}]
  %s1 = inlined_call_operand.vmem [shape: s32[16,2], index: 1, kind: input, shape index: {}]
  %s2 = inlined_call_operand.vmem [shape: f32[16,1], index: 2, kind: output, shape index: {}]
  %s3 = sld [smem:[#allocation0]]
  $region26: #{tpu_custom_call.1} parent=0
    _
  %s5 = ssub.s32 1, %s3
  %s6 = scalar_select 0, %s5, %s3
  // Predicated region
  $region2: #{tpu_custom_call.1} parent=0 // pred_check
    _
  $region3: #{tpu_custom_call.1} parent=0 // pred_check_branch
    %8 = sbr.rel (0) target = $region5
  $region4: #{tpu_custom_call.1} parent=0 // pred_region
    _
  $region5: #{tpu_custom_call.1} parent=0 // pred_fallthru
    _
  // Predicated region
  $region6: #{tpu_custom_call.1} parent=0 // pred_check
    _
  $region7: #{tpu_custom_call.1} parent=0 // pred_check_branch
    %10 = sbr.rel (0) target = $region9
  $region8: #{tpu_custom_call.1} parent=0 // pred_region
    _
  $region9: #{tpu_custom_call.1} parent=0 // pred_fallthru
    _
  %v11 = vld [vmem:[%s0] sm:$0xff]
  %v12 = vld [vmem:[%s0 + $0x8] sm:$0xff]
  %v13 = vld [vmem:[%s1] sm:$0xff]
  %v14 = vld [vmem:[%s1 + $0x8] sm:$0xff]
  %v17 = vlaneseq
  %v18 = vand.u32 %v17, 127
  %s19 = smul.u32 0, 128
  %v20 = vstv %s19
  %v21 = vadd.s32 %v18, %v20
  %22 = vset.pattern.permute.xlu0 0
  %23 = vperm.xlu0 %22, %v13
  %v24 = vpop.permute.xlu0 %23
  %25 = vset.pattern.permute.xlu0 0
  %26 = vperm.xlu0 %25, %v14
  %v27 = vpop.permute.xlu0 %26
  %vm28 = vcmp.eq.s32.totalorder %v21, %v24
  %vm29 = vcmp.eq.s32.totalorder %v21, %v27
  %v30 = vsel %vm28, %v11, 0.0
  %v31 = vsel %vm29, %v12, 0.0
  %32 = vadd.xlane.f32.xlu0 %v30
  %v33 = vpop.xlane.xlu0 %32
  %34 = vadd.xlane.f32.xlu0 %v31
  %v35 = vpop.xlane.xlu0 %34
  %v36 = vlaneseq
  %v37 = vshrl.u32 %v36, 7
  %v38 = vadd.s32 %v37, 8
  %s39 = smul.u32 0, 16
  %v40 = vstv %s39
  %v41 = vadd.s32 %v37, %v40
  %v42 = vadd.s32 %v38, %v40
  %vm43 = vcmp.lt.s32.totalorder %v41, 16
  %vm44 = vcmp.lt.s32.totalorder %v42, 16
  %v45 = vmul.f32 %v33, %v13
  %v46 = vmul.f32 %v35, %v14
  %v47 = vsel %vm43, %v45, 0.0
  %v48 = vsel %vm44, %v46, 0.0
  %p49 = scmp.eq.s32.totalorder 0, 0
  // Predicated region
  $region10: #{tpu_custom_call.1} parent=0 // pred_check
    %p50 = pneg %p49
  $region11: #{tpu_custom_call.1} parent=0 // pred_check_branch
    %52 = sbr.rel (%p50) target = $region13
  $region12: #{tpu_custom_call.1} parent=0 // pred_region
    %55 = vrot.lane.b32.xlu0 %v47, 127
    %v56 = vpop.permute.xlu0 %55
    %57 = vrot.lane.b32.xlu0 %v48, 127
    %v58 = vpop.permute.xlu0 %57
    %vm61 = vcmask 7168
    %62 = vst.msk [vmem:[%s2] sm:$0xff] %vm61, %v56
    %63 = vst.msk [vmem:[%s2 + $0x8] sm:$0xff] %vm61, %v58
  $region13: #{tpu_custom_call.1} parent=0 // pred_fallthru
    _
  %p64 = scmp.gt.s32.totalorder 0, 0
  // Predicated region
  $region14: #{tpu_custom_call.1} parent=0 // pred_check
    %p65 = pneg %p64
  $region15: #{tpu_custom_call.1} parent=0 // pred_check_branch
    %67 = sbr.rel (%p65) target = $region17
  $region16: #{tpu_custom_call.1} parent=0 // pred_region
    %v68 = vld [vmem:[%s2] sm:$0xff]
    %v69 = vld [vmem:[%s2 + $0x8] sm:$0xff]
    %72 = vrot.lane.b32.xlu0 %v47, 127
    %v73 = vpop.permute.xlu0 %72
    %74 = vrot.lane.b32.xlu0 %v48, 127
    %v75 = vpop.permute.xlu0 %74
    %v78 = vadd.f32 %v68, %v73
    %v79 = vadd.f32 %v69, %v75
    %vm80 = vcmask 7168
    %81 = vst.msk [vmem:[%s2] sm:$0xff] %vm80, %v78
    %82 = vst.msk [vmem:[%s2 + $0x8] sm:$0xff] %vm80, %v79
  $region17: #{tpu_custom_call.1} parent=0 // pred_fallthru
    _
  // Predicated region
  $region18: #{tpu_custom_call.1} parent=0 // pred_check
    _
  $region19: #{tpu_custom_call.1} parent=0 // pred_check_branch
    %84 = sbr.rel (0) target = $region21
  $region20: #{tpu_custom_call.1} parent=0 // pred_region
    _
  $region21: #{tpu_custom_call.1} parent=0 // pred_fallthru
    _
  // Predicated region
  $region22: #{tpu_custom_call.1} parent=0 // pred_check
    _
  $region23: #{tpu_custom_call.1} parent=0 // pred_check_branch
    %86 = sbr.rel (0) target = $region25
  $region24: #{tpu_custom_call.1} parent=0 // pred_region
    _
  $region25: #{tpu_custom_call.1} parent=0 // pred_fallthru
    _

</llo_original>
